<compile_context>
chip_gen: v7x
topology: tpu7x:2x2x1
jax: 0.10.0
libtpu: 0.0.40
codegen_flags: <defaults>
</compile_context>

<pallas_src>
import functools

import jax
import jax.numpy as jnp
from jax.experimental import pallas as pl
from jax.experimental.pallas import tpu as pltpu

_LANES = 128                       # class axis padded to a multiple of this
_SUBLANES = 8                      # row-axis granularity
_VMEM_BUDGET = 24 * 1024 * 1024    # block budget, safe on v5e / v6e / v7x


def _round_up(x, m):
    return (x + m - 1) // m * m


def _linear_kernel(x_ref, w_ref, b_ref, o_ref):
    # x_ref: (tm, D) f32   -> cast to bf16 in-kernel (VPU, hidden under DMA)
    # w_ref: (D, C_pad) bf16  (resident across the whole grid)
    # b_ref: (1, C_pad) f32   (resident)
    # o_ref: (tm, C_pad) f32  (lane-dense stores)
    x = x_ref[...].astype(jnp.bfloat16)
    acc = jnp.dot(x, w_ref[...], preferred_element_type=jnp.float32)
    o_ref[...] = acc + b_ref[...]


def prepare_params(weight, bias):
    """One-time prep (model-load time): pre-transposed, lane-padded params.

    weight: (C, D) f32 (PyTorch nn.Linear layout); bias: (C,) f32.
    Returns (D, C_pad) bf16 weight and (1, C_pad) f32 bias, C padded to a
    multiple of 128 lanes with zeros.
    """
    C, D = weight.shape
    C_pad = _round_up(C, _LANES)
    w_t = jnp.zeros((D, C_pad), jnp.bfloat16).at[:, :C].set(
        weight.T.astype(jnp.bfloat16))
    b_p = jnp.zeros((1, C_pad), jnp.float32).at[:, :C].set(
        bias.astype(jnp.float32))
    return w_t, b_p


def _pick_tm(B, D, C_pad, tm):
    """Clamp the row tile so double-buffered blocks fit the VMEM budget."""
    resident = D * C_pad * 2 + C_pad * 4                 # bf16 weight + f32 bias
    per_row = 2 * D * 4 + 2 * C_pad * 4                  # 2x-buffered f32 x + f32 out
    avail = max(_VMEM_BUDGET - resident, per_row * _SUBLANES)
    tm_max = max(_SUBLANES, (avail // per_row) // _SUBLANES * _SUBLANES)
    tm = min(tm, tm_max, _round_up(B, _SUBLANES))
    # Keep >= 2 grid steps when the batch supports full tiles (v7x: 2 TCs/chip).
    if B >= 2 * _LANES and pl.cdiv(B, tm) < 2:
        tm = max(_LANES, _round_up(pl.cdiv(B, 2), _SUBLANES))
    return max(tm, _SUBLANES)


@functools.partial(jax.jit, static_argnames=("num_class", "tm"))
def logistic_regression_forward(x, w_t, b_p, *, num_class, tm=256):
    """logits = x @ W.T + b.

    x: (B, D) f32 (or bf16); w_t: (D, C_pad) bf16; b_p: (1, C_pad) f32.
    Returns (B, num_class) f32 logits.  (The graph argument `g` of the
    PyTorch forward is unused and therefore omitted.)
    """
    B, D = x.shape
    D_w, C_pad = w_t.shape
    assert D == D_w and C_pad % _LANES == 0 and num_class <= C_pad

    tm = _pick_tm(B, D, C_pad, tm)
    grid = (pl.cdiv(B, tm),)

    itemsize = jnp.dtype(x.dtype).itemsize
    cost = pl.CostEstimate(
        flops=2 * B * D * C_pad,
        transcendentals=0,
        bytes_accessed=B * D * itemsize + D * C_pad * 2 + C_pad * 4
        + B * C_pad * 4,
    )

    out = pl.pallas_call(
        _linear_kernel,
        out_shape=jax.ShapeDtypeStruct((B, C_pad), jnp.float32),
        grid_spec=pltpu.PrefetchScalarGridSpec(
            num_scalar_prefetch=0,
            grid=grid,
            in_specs=[
                pl.BlockSpec((tm, D), lambda i: (i, 0)),      # x row-tile, full K
                pl.BlockSpec((D, C_pad), lambda i: (0, 0)),   # weight: resident
                pl.BlockSpec((1, C_pad), lambda i: (0, 0)),   # bias: resident
            ],
            out_specs=pl.BlockSpec((tm, C_pad), lambda i: (i, 0)),
        ),
        compiler_params=pltpu.CompilerParams(
            dimension_semantics=("parallel",),
            vmem_limit_bytes=32 * 1024 * 1024,
        ),
        cost_estimate=cost,
    )(x, w_t, b_p)

    if C_pad != num_class:
        out = out[:, :num_class]   # drop zero-logit padding columns
    return out


def init_linear_params(key, num_dim, num_class):
    """Deterministic nn.Linear-style init: U(-1/sqrt(num_dim), 1/sqrt(num_dim))."""
    k_w, k_b = jax.random.split(key)
    bound = 1.0 / jnp.sqrt(jnp.float32(num_dim))
    weight = jax.random.uniform(
        k_w, (num_class, num_dim), dtype=jnp.float32, minval=-bound, maxval=bound)
    bias = jax.random.uniform(
        k_b, (num_class,), dtype=jnp.float32, minval=-bound, maxval=bound)
    return weight, bias


if __name__ == "__main__":
    key = jax.random.PRNGKey(0)
    k_x, k_p = jax.random.split(key)

    # batch=384 with tm=256 -> grid=(2,): one full tile + one ragged tile,
    # exercising megacore sharding and the Pallas ragged-edge handling.
    batch, num_dim, num_class = 384, 32, 16
    x = jax.random.normal(k_x, (batch, num_dim), dtype=jnp.float32)
    weight, bias = init_linear_params(k_p, num_dim, num_class)

    # One-time param prep (model-load time, not per forward).
    w_t, b_p = prepare_params(weight, bias)

    logits = logistic_regression_forward(x, w_t, b_p, num_class=num_class)
    logits = jax.block_until_ready(logits)

    # Pure-JAX f32 reference (loose tolerance: kernel matmuls in bf16).
    ref = jnp.dot(x, weight.T, precision=jax.lax.Precision.HIGHEST) + bias
    assert logits.shape == (batch, num_class)
    assert jnp.allclose(logits, ref, atol=5e-2, rtol=5e-2), (
        float(jnp.max(jnp.abs(logits - ref))))

    print("KERNEL_OK")
</pallas_src>

<mosaic_0001>
module attributes {stable_mosaic.version = 11 : i64} {
  func.func @_linear_kernel(%arg0: i32, %arg1: memref<256x32xf32, #tpu.memory_space<vmem>>, %arg2: memref<32x128xbf16, #tpu.memory_space<vmem>>, %arg3: memref<1x128xf32, #tpu.memory_space<vmem>>, %arg4: memref<256x128xf32, #tpu.memory_space<vmem>>) attributes {dimension_semantics = [#tpu.dimension_semantics<parallel>], iteration_bounds = array<i64: 2>, scalar_prefetch = 0 : i64, scratch_operands = 0 : i64, tpu.core_type = #tpu.core_type<tc>, window_params = [{transform_indices = @transform_0, window_bounds = array<i64: 256, 32>}, {pipeline_mode = #tpu.pipeline_mode<synchronous>, transform_indices = @transform_1, window_bounds = array<i64: 32, 128>}, {pipeline_mode = #tpu.pipeline_mode<synchronous>, transform_indices = @transform_2, window_bounds = array<i64: 1, 128>}, {transform_indices = @transform_3, window_bounds = array<i64: 256, 128>}]} {
    %c0 = arith.constant 0 : index
    %c0_0 = arith.constant 0 : index
    %0 = vector.load %arg1[%c0, %c0_0] : memref<256x32xf32, #tpu.memory_space<vmem>>, vector<256x32xf32>
    %1 = arith.truncf %0 : vector<256x32xf32> to vector<256x32xbf16>
    %c0_1 = arith.constant 0 : index
    %c0_2 = arith.constant 0 : index
    %2 = vector.load %arg2[%c0_1, %c0_2] : memref<32x128xbf16, #tpu.memory_space<vmem>>, vector<32x128xbf16>
    %cst = arith.constant dense<0.000000e+00> : vector<256x128xf32>
    %3 = tpu.matmul %1, %2, %cst {dimension_numbers = #tpu.dot_dimension_numbers<[1], [0], [0], [1], [0, 0, 1, 1], [], []>} : vector<256x32xbf16>, vector<32x128xbf16>, vector<256x128xf32> -> vector<256x128xf32>
    %c0_3 = arith.constant 0 : index
    %c0_4 = arith.constant 0 : index
    %4 = vector.load %arg3[%c0_3, %c0_4] : memref<1x128xf32, #tpu.memory_space<vmem>>, vector<1x128xf32>
    %5 = vector.broadcast %4 : vector<1x128xf32> to vector<256x128xf32>
    %6 = arith.addf %3, %5 : vector<256x128xf32>
    %c0_5 = arith.constant 0 : index
    %c0_6 = arith.constant 0 : index
    %7 = vector.load %arg4[%c0_5, %c0_6] : memref<256x128xf32, #tpu.memory_space<vmem>>, vector<256x128xf32>
    tpu.vector_store %arg4[%c0_5, %c0_6], %6 {strides = array<i32>} : memref<256x128xf32, #tpu.memory_space<vmem>>, vector<256x128xf32>,
    return
  }
  func.func @transform_0(%arg0: i32) -> (i32, i32) {
    %c0_i32 = arith.constant 0 : i32
    %c0_i32_0 = arith.constant 0 : i32
    return %arg0, %c0_i32 : i32, i32
  }
  func.func @transform_1(%arg0: i32) -> (i32, i32) {
    %c0_i32 = arith.constant 0 : i32
    %c0_i32_0 = arith.constant 0 : i32
    %c0_i32_1 = arith.constant 0 : i32
    return %c0_i32, %c0_i32_0 : i32, i32
  }
  func.func @transform_2(%arg0: i32) -> (i32, i32) {
    %c0_i32 = arith.constant 0 : i32
    %c0_i32_0 = arith.constant 0 : i32
    %c0_i32_1 = arith.constant 0 : i32
    return %c0_i32, %c0_i32_0 : i32, i32
  }
  func.func @transform_3(%arg0: i32) -> (i32, i32) {
    %c0_i32 = arith.constant 0 : i32
    %c0_i32_0 = arith.constant 0 : i32
    return %arg0, %c0_i32 : i32, i32
  }
}

</mosaic_0001>

<llo_original>
// kernel: logistic_regression_forward.1
$region0: #{logistic_regression_forward.1}
  #allocation0 [shape = 'u32[]', space=smem, size = 0x4, offset = 0x4, fixed_abs, tag = 'smem constant byte address 0x4 - core index']
  #allocation1 [shape = 'u32[144,128]{1,0:T(1,128)}', space=vmem, size = 0x12000, scoped, tag = 'internal scratch']
  %s0 = inlined_call_operand.vmem [shape: f32[384,32], index: 0, kind: input, shape index: {}]
  %s1 = inlined_call_operand.vmem [shape: bf16[32,128], index: 1, kind: input, shape index: {}]
  %s2 = inlined_call_operand.vmem [shape: f32[1,128], index: 2, kind: input, shape index: {}]
  %s3 = inlined_call_operand.vmem [shape: f32[384,128], index: 3, kind: output, shape index: {}]
  %s4 = sld [smem:[#allocation0]]
  $region93: #{logistic_regression_forward.1} parent=0
    _
  %s6 = ssub.s32 1, %s4
  %s7 = scalar_select 0, %s6, %s4
  $region1: #{logistic_regression_forward.1} parent=0
    #allocation2 [shape = 'u8[262144]{0}', space=vmem, size = 0x40000, scoped, tag = 'output window, operand 0']
    loop: start=0, step=1, limit=4
    $region2: #{logistic_regression_forward.1} parent=1 // loop_pre_header
      _
    $region3: #{logistic_regression_forward.1} parent=1 // loop_header
      %s9 = sphi 0, %s13
      %p10 = scmp.ge.s32.totalorder %s9, 4
      %s19 = sphi 0, %s21
      %s22 = sphi 0, %s19
      %s23 = sphi 0, %s22
      %s39 = sphi 0, %s23
      %s43 = sphi 0, %s43
      %s45 = sphi 0, %s43
      %s46 = sphi 0, %s45
      %s60 = sphi 0, %s46
      %s64 = sphi 0, %s64
      %s66 = sphi 0, %s64
      %s67 = sphi 0, %s66
      %s81 = sphi 0, %s67
      %s87 = sphi 0, %s89
      %s90 = sphi 0, %s87
      %s91 = sphi 0, %s90
      %s107 = sphi 0, %s91
    $region4: #{logistic_regression_forward.1} parent=1 // loop_header_branch
      %12 = sbr.rel (%p10) target = $region8
    $region5: #{logistic_regression_forward.1} parent=1 // loop_body
      %s14 = ssub.s32 %s9, 1
      %s15 = ssub.s32 %s9, 2
      %s16 = sadd.s32 %s9, 1
      %s17 = ssub.s32 %s9, %s16
      %p18 = scmp.eq.s32.totalorder %s17, 0
      %s20 = sadd.s32 %s19, 1
      %s21 = scalar_select %p18, %s19, %s20
      %p24 = pneg %p18
      %p25 = scmp.eq.s32.totalorder %s9, 1
      %p26 = por %p24, %p25
      %p27 = scmp.ne.s32.totalorder %s19, %s22
      %p28 = scmp.eq.s32.totalorder %s9, 0
      %p29 = por %p27, %p28
      %p30 = scmp.ne.s32.totalorder %s19, %s22
      %p31 = scmp.eq.s32.totalorder %s14, 1
      %p32 = por %p30, %p31
      %p33 = scmp.ne.s32.totalorder %s22, %s23
      %p34 = scmp.eq.s32.totalorder %s14, 0
      %p35 = por %p33, %p34
      %p36 = scmp.ne.s32.totalorder %s22, %s23
      %p37 = scmp.eq.s32.totalorder %s15, 1
      %p38 = por %p36, %p37
      %p40 = scmp.ne.s32.totalorder %s23, %s39
      %p41 = scmp.eq.s32.totalorder %s15, 0
      %p42 = por %p40, %p41
      %s44 = sadd.s32 %s43, 1
      %p47 = scmp.eq.s32.totalorder %s9, 1
      %p48 = scmp.ne.s32.totalorder %s43, %s45
      %p49 = scmp.eq.s32.totalorder %s9, 0
      %p50 = por %p48, %p49
      %p51 = scmp.ne.s32.totalorder %s43, %s45
      %p52 = scmp.eq.s32.totalorder %s14, 1
      %p53 = por %p51, %p52
      %p54 = scmp.ne.s32.totalorder %s45, %s46
      %p55 = scmp.eq.s32.totalorder %s14, 0
      %p56 = por %p54, %p55
      %p57 = scmp.ne.s32.totalorder %s45, %s46
      %p58 = scmp.eq.s32.totalorder %s15, 1
      %p59 = por %p57, %p58
      %p61 = scmp.ne.s32.totalorder %s46, %s60
      %p62 = scmp.eq.s32.totalorder %s15, 0
      %p63 = por %p61, %p62
      %s65 = sadd.s32 %s64, 1
      %p68 = scmp.eq.s32.totalorder %s9, 1
      %p69 = scmp.ne.s32.totalorder %s64, %s66
      %p70 = scmp.eq.s32.totalorder %s9, 0
      %p71 = por %p69, %p70
      %p72 = scmp.ne.s32.totalorder %s64, %s66
      %p73 = scmp.eq.s32.totalorder %s14, 1
      %p74 = por %p72, %p73
      %p75 = scmp.ne.s32.totalorder %s66, %s67
      %p76 = scmp.eq.s32.totalorder %s14, 0
      %p77 = por %p75, %p76
      %p78 = scmp.ne.s32.totalorder %s66, %s67
      %p79 = scmp.eq.s32.totalorder %s15, 1
      %p80 = por %p78, %p79
      %p82 = scmp.ne.s32.totalorder %s67, %s81
      %p83 = scmp.eq.s32.totalorder %s15, 0
      %p84 = por %p82, %p83
      %s85 = ssub.s32 %s9, %s16
      %p86 = scmp.eq.s32.totalorder %s85, 0
      %s88 = sadd.s32 %s87, 1
      %s89 = scalar_select %p86, %s87, %s88
      %p92 = pneg %p86
      %p93 = scmp.eq.s32.totalorder %s9, 1
      %p94 = por %p92, %p93
      %p95 = scmp.ne.s32.totalorder %s87, %s90
      %p96 = scmp.eq.s32.totalorder %s9, 0
      %p97 = por %p95, %p96
      %p98 = scmp.ne.s32.totalorder %s87, %s90
      %p99 = scmp.eq.s32.totalorder %s14, 1
      %p100 = por %p98, %p99
      %p101 = scmp.ne.s32.totalorder %s90, %s91
      %p102 = scmp.eq.s32.totalorder %s14, 0
      %p103 = por %p101, %p102
      %p104 = scmp.ne.s32.totalorder %s90, %s91
      %p105 = scmp.eq.s32.totalorder %s15, 1
      %p106 = por %p104, %p105
      %p108 = scmp.ne.s32.totalorder %s91, %s107
      %p109 = scmp.eq.s32.totalorder %s15, 0
      %p110 = por %p108, %p109
      %p111 = scmp.le.s32.totalorder 1, %s9
      %p112 = scmp.lt.s32.totalorder %s9, 3
      %p113 = pnand %p111, %p112
      %p114 = pneg %p113
      // Predicated region
      $region9: #{logistic_regression_forward.1} parent=5 // pred_check
        _
      $region10: #{logistic_regression_forward.1} parent=5 // pred_check_branch
        %116 = sbr.rel (%p113) target = $region12
      $region11: #{logistic_regression_forward.1} parent=5 // pred_region
        %s117 = ssub.s32 %s9, 1
        // Predicated region
        $region13: #{logistic_regression_forward.1} parent=11 // pred_check
          %p118 = pneg %p56
        $region14: #{logistic_regression_forward.1} parent=11 // pred_check_branch
          %120 = sbr.rel (%p118) target = $region16
        $region15: #{logistic_regression_forward.1} parent=11 // pred_region
          _
        $region16: #{logistic_regression_forward.1} parent=11 // pred_fallthru
          _
        // Predicated region
        $region17: #{logistic_regression_forward.1} parent=11 // pred_check
          %p121 = pneg %p77
        $region18: #{logistic_regression_forward.1} parent=11 // pred_check_branch
          %123 = sbr.rel (%p121) target = $region20
        $region19: #{logistic_regression_forward.1} parent=11 // pred_region
          _
        $region20: #{logistic_regression_forward.1} parent=11 // pred_fallthru
          _
      $region12: #{logistic_regression_forward.1} parent=5 // pred_fallthru
        _
      %p124 = scmp.lt.s32.totalorder %s9, 2
      // Predicated region
      $region21: #{logistic_regression_forward.1} parent=5 // pred_check
        %p125 = pneg %p124
      $region22: #{logistic_regression_forward.1} parent=5 // pred_check_branch
        %127 = sbr.rel (%p125) target = $region24
      $region23: #{logistic_regression_forward.1} parent=5 // pred_region
        // Predicated region
        $region25: #{logistic_regression_forward.1} parent=23 // pred_check
          %p128 = pneg %p29
        $region26: #{logistic_regression_forward.1} parent=23 // pred_check_branch
          %130 = sbr.rel (%p128) target = $region28
        $region27: #{logistic_regression_forward.1} parent=23 // pred_region
          %s131 = smul.u32 32, %s9
          %s132 = ssub.s32 48, %s131
          %p133 = scmp.lt.s32.totalorder %s132, 32
          %s134 = scalar_select %p133, %s132, 32
          %s135 = smul.u32 128, %s134
          %p136 = scmp.lt.s32.totalorder %s131, 47
          %s137 = scalar_select %p136, %s131, 47
          %s138 = smul.addr %s137, 8
          %s139 = scalar_lea.vmem %s0, %s138
          %s140 = smul.u32 32, %s9
          %s141 = ssub.s32 48, %s140
          %p142 = scmp.lt.s32.totalorder %s141, 32
          %s143 = scalar_select %p142, %s141, 32
          %s144 = smul.u32 128, %s143
        $region28: #{logistic_regression_forward.1} parent=23 // pred_fallthru
          _
      $region24: #{logistic_regression_forward.1} parent=5 // pred_fallthru
        _
      %p145 = scmp.le.s32.totalorder 1, %s9
      %p146 = scmp.lt.s32.totalorder %s9, 3
      %p147 = pnand %p145, %p146
      %p148 = pneg %p147
      // Predicated region
      $region29: #{logistic_regression_forward.1} parent=5 // pred_check
        _
      $region30: #{logistic_regression_forward.1} parent=5 // pred_check_branch
        %150 = sbr.rel (%p147) target = $region32
      $region31: #{logistic_regression_forward.1} parent=5 // pred_region
        %s151 = ssub.s32 %s9, 1
        %s152 = smul.u32 32, %s14
        %s153 = ssub.s32 48, %s152
        %p154 = scmp.lt.s32.totalorder %s153, 32
        %s155 = scalar_select %p154, %s153, 32
        %s156 = smul.u32 128, %s155
        %p157 = scmp.lt.s32.totalorder %s152, 47
        %s158 = scalar_select %p157, %s152, 47
        %s159 = smul.addr %s158, 8
        %s160 = scalar_lea.vmem %s0, %s159
        %p161 = pneg %p35
        %p162 = pneg %p32
        %p163 = pneg %p56
        %p164 = pneg %p53
        %p165 = pneg %p77
        %p166 = pneg %p74
        %p167 = pneg %p103
        %p168 = pneg %p100
        %s169 = sand.u32 %s90, 1
        %s170 = sand.u32 %s90, 1
        %s171 = smul.addr %s170, 256
        %s172 = scalar_lea.vmem [#allocation2], %s171
        %s173 = smul.u32 32, %s14
        %s174 = ssub.s32 48, %s173
        %p175 = scmp.lt.s32.totalorder %s174, 32
        %s176 = scalar_select %p175, %s174, 32
        %s177 = smul.u32 128, %s176
        %p178 = scmp.lt.s32.totalorder %s173, 47
        %s179 = scalar_select %p178, %s173, 47
        %s180 = smul.addr %s179, 8
        %s181 = scalar_lea.vmem %s0, %s180
        %s182 = smul.u32 32, %s14
        %s183 = ssub.s32 48, %s182
        %p184 = scmp.lt.s32.totalorder %s183, 32
        %s185 = scalar_select %p184, %s183, 32
        %s186 = smul.u32 128, %s185
        %s187 = smul.u32 32, %s14
        %s188 = ssub.s32 48, %s187
        %p189 = scmp.lt.s32.totalorder %s188, 32
        %s190 = scalar_select %p189, %s188, 32
        %s191 = smul.u32 128, %s190
        %v193 = vld [vmem:[%s181] sm:$0xff]
        %v194 = vld [vmem:[%s181 + $0x8] sm:$0xff]
        %v195 = vld [vmem:[%s181 + $0x10] sm:$0xff]
        %v196 = vld [vmem:[%s181 + $0x18] sm:$0xff]
        %v197 = vld [vmem:[%s181 + $0x20] sm:$0xff]
        %v198 = vld [vmem:[%s181 + $0x28] sm:$0xff]
        %v199 = vld [vmem:[%s181 + $0x30] sm:$0xff]
        %v200 = vld [vmem:[%s181 + $0x38] sm:$0xff]
        %v201 = vld [vmem:[%s181 + $0x40] sm:$0xff]
        %v202 = vld [vmem:[%s181 + $0x48] sm:$0xff]
        %v203 = vld [vmem:[%s181 + $0x50] sm:$0xff]
        %v204 = vld [vmem:[%s181 + $0x58] sm:$0xff]
        %v205 = vld [vmem:[%s181 + $0x60] sm:$0xff]
        %v206 = vld [vmem:[%s181 + $0x68] sm:$0xff]
        %v207 = vld [vmem:[%s181 + $0x70] sm:$0xff]
        %v208 = vld [vmem:[%s181 + $0x78] sm:$0xff]
        %v209 = vld [vmem:[%s181 + $0x80] sm:$0xff]
        %v210 = vld [vmem:[%s181 + $0x88] sm:$0xff]
        %v211 = vld [vmem:[%s181 + $0x90] sm:$0xff]
        %v212 = vld [vmem:[%s181 + $0x98] sm:$0xff]
        %v213 = vld [vmem:[%s181 + $0xa0] sm:$0xff]
        %v214 = vld [vmem:[%s181 + $0xa8] sm:$0xff]
        %v215 = vld [vmem:[%s181 + $0xb0] sm:$0xff]
        %v216 = vld [vmem:[%s181 + $0xb8] sm:$0xff]
        %v217 = vld [vmem:[%s181 + $0xc0] sm:$0xff]
        %v218 = vld [vmem:[%s181 + $0xc8] sm:$0xff]
        %v219 = vld [vmem:[%s181 + $0xd0] sm:$0xff]
        %v220 = vld [vmem:[%s181 + $0xd8] sm:$0xff]
        %v221 = vld [vmem:[%s181 + $0xe0] sm:$0xff]
        %v222 = vld [vmem:[%s181 + $0xe8] sm:$0xff]
        %v223 = vld [vmem:[%s181 + $0xf0] sm:$0xff]
        %v224 = vld [vmem:[%s181 + $0xf8] sm:$0xff]
        %v225 = vpack.c.bf16 %v194, %v193
        %v226 = vpack.c.bf16 %v196, %v195
        %v227 = vpack.c.bf16 %v198, %v197
        %v228 = vpack.c.bf16 %v200, %v199
        %v229 = vpack.c.bf16 %v202, %v201
        %v230 = vpack.c.bf16 %v204, %v203
        %v231 = vpack.c.bf16 %v206, %v205
        %v232 = vpack.c.bf16 %v208, %v207
        %v233 = vpack.c.bf16 %v210, %v209
        %v234 = vpack.c.bf16 %v212, %v211
        %v235 = vpack.c.bf16 %v214, %v213
        %v236 = vpack.c.bf16 %v216, %v215
        %v237 = vpack.c.bf16 %v218, %v217
        %v238 = vpack.c.bf16 %v220, %v219
        %v239 = vpack.c.bf16 %v222, %v221
        %v240 = vpack.c.bf16 %v224, %v223
        %v241 = vld [vmem:[%s1] sm:$0xf]
        %v242 = vld [vmem:[%s1 + $0x4] sm:$0xf]
        %v243 = vld [vmem:[%s1 + $0x8] sm:$0xf]
        %v244 = vld [vmem:[%s1 + $0xc] sm:$0xf]
        %v245 = vld [vmem:[%s2] sm:$0x1]
        %v247 = vlaneseq
        %v248 = vshrl.u32 %v247, 7
        %v249 = vsub.s32 0, %v248
        %v250 = vrot.slane %v245, %v249
        %v256 = vunpack.c.l.b16 %v241
        %v257 = vunpack.c.l.b16 %v242
        %v258 = vunpack.c.l.b16 %v243
        %v259 = vunpack.c.l.b16 %v244
        %v260 = vpack.c.b16 %v257, %v256
        %v261 = vpack.c.b16 %v259, %v258
        %vm264 = vcmask 261120
        %v266 = vsel %vm264, %v225, 0
        %v269 = vsel %vm264, %v226, 0
        %v272 = vsel %vm264, %v227, 0
        %v275 = vsel %vm264, %v228, 0
        %v278 = vsel %vm264, %v229, 0
        %v281 = vsel %vm264, %v230, 0
        %v284 = vsel %vm264, %v231, 0
        %v287 = vsel %vm264, %v232, 0
        %v290 = vsel %vm264, %v233, 0
        %v293 = vsel %vm264, %v234, 0
        %v296 = vsel %vm264, %v235, 0
        %v299 = vsel %vm264, %v236, 0
        %v302 = vsel %vm264, %v237, 0
        %v305 = vsel %vm264, %v238, 0
        %v308 = vsel %vm264, %v239, 0
        %v311 = vsel %vm264, %v240, 0
        %313 = vmatprep.subr.bf16.mxu0 0
        %314 = vmatpush1.bf16.msra.mxu0 %v260
        %315 = vmatprep.subr.bf16.mxu0 0
        %316 = vmatpush1.bf16.msra.mxu0 %v261
        %317 = vmatprep.subr.bf16.mxu0 0
        %318 = vmatpush1.bf16.msra.mxu0 0
        %319 = vmatprep.subr.bf16.mxu0 0
        %320 = vmatpush1.bf16.msra.mxu0 0
        %321 = vmatprep.subr.bf16.mxu0 0
        %322 = vmatpush1.bf16.msra.mxu0 0
        %323 = vmatprep.subr.bf16.mxu0 0
        %324 = vmatpush1.bf16.msra.mxu0 0
        %325 = vmatprep.subr.bf16.mxu0 0
        %326 = vmatpush1.bf16.msra.mxu0 0
        %327 = vmatprep.subr.bf16.mxu0 0
        %328 = vmatpush1.bf16.msra.mxu0 0
        %329 = vmatprep.subr.bf16.mxu0 0
        %330 = vmatpush1.bf16.msra.mxu0 0
        %331 = vmatprep.subr.bf16.mxu0 0
        %332 = vmatpush1.bf16.msra.mxu0 0
        %333 = vmatprep.subr.bf16.mxu0 0
        %334 = vmatpush1.bf16.msra.mxu0 0
        %335 = vmatprep.subr.bf16.mxu0 0
        %336 = vmatpush1.bf16.msra.mxu0 0
        %337 = vmatprep.subr.bf16.mxu0 0
        %338 = vmatpush1.bf16.msra.mxu0 0
        %339 = vmatprep.subr.bf16.mxu0 0
        %340 = vmatpush1.bf16.msra.mxu0 0
        %341 = vmatprep.subr.bf16.mxu0 0
        %342 = vmatpush1.bf16.msra.mxu0 0
        %343 = vmatprep.subr.bf16.mxu0 0
        %344 = vmatpush1.bf16.msra.mxu0 0
        %345 = vmatprep.mubr.bf16.mxu0 0
        %346 = vmatmul.mubr.bf16.gmra.mrb[0].mxu0 %v266
        %v347 = vpop.f32.mrb[0].mxu0
        %v348 = vadd.f32 %v250, %v347
        %v349 = vpop.f32.mrb[0].mxu0
        %v350 = vpop.f32.mrb[0].mxu0
        %v351 = vadd.f32 %v250, %v350
        %v352 = vpop.f32.mrb[0].mxu0
        %353 = vmatprep.mubr.bf16.mxu0 0
        %354 = vmatmul.mubr.bf16.gmra.mrb[0].mxu0 %v269
        %v355 = vpop.f32.mrb[0].mxu0
        %v356 = vadd.f32 %v250, %v355
        %v357 = vpop.f32.mrb[0].mxu0
        %v358 = vpop.f32.mrb[0].mxu0
        %v359 = vadd.f32 %v250, %v358
        %v360 = vpop.f32.mrb[0].mxu0
        %361 = vmatprep.mubr.bf16.mxu0 0
        %362 = vmatmul.mubr.bf16.gmra.mrb[0].mxu0 %v272
        %v363 = vpop.f32.mrb[0].mxu0
        %v364 = vadd.f32 %v250, %v363
        %v365 = vpop.f32.mrb[0].mxu0
        %v366 = vpop.f32.mrb[0].mxu0
        %v367 = vadd.f32 %v250, %v366
        %v368 = vpop.f32.mrb[0].mxu0
        %369 = vmatprep.mubr.bf16.mxu0 0
        %370 = vmatmul.mubr.bf16.gmra.mrb[0].mxu0 %v275
        %v371 = vpop.f32.mrb[0].mxu0
        %v372 = vadd.f32 %v250, %v371
        %v373 = vpop.f32.mrb[0].mxu0
        %v374 = vpop.f32.mrb[0].mxu0
        %v375 = vadd.f32 %v250, %v374
        %v376 = vpop.f32.mrb[0].mxu0
        %377 = vmatprep.mubr.bf16.mxu0 0
        %378 = vmatmul.mubr.bf16.gmra.mrb[0].mxu0 %v278
        %v379 = vpop.f32.mrb[0].mxu0
        %v380 = vadd.f32 %v250, %v379
        %v381 = vpop.f32.mrb[0].mxu0
        %v382 = vpop.f32.mrb[0].mxu0
        %v383 = vadd.f32 %v250, %v382
        %v384 = vpop.f32.mrb[0].mxu0
        %385 = vmatprep.mubr.bf16.mxu0 0
        %386 = vmatmul.mubr.bf16.gmra.mrb[0].mxu0 %v281
        %v387 = vpop.f32.mrb[0].mxu0
        %v388 = vadd.f32 %v250, %v387
        %v389 = vpop.f32.mrb[0].mxu0
        %v390 = vpop.f32.mrb[0].mxu0
        %v391 = vadd.f32 %v250, %v390
        %v392 = vpop.f32.mrb[0].mxu0
        %393 = vmatprep.mubr.bf16.mxu0 0
        %394 = vmatmul.mubr.bf16.gmra.mrb[0].mxu0 %v284
        %v395 = vpop.f32.mrb[0].mxu0
        %v396 = vadd.f32 %v250, %v395
        %v397 = vpop.f32.mrb[0].mxu0
        %v398 = vpop.f32.mrb[0].mxu0
        %v399 = vadd.f32 %v250, %v398
        %v400 = vpop.f32.mrb[0].mxu0
        %401 = vmatprep.mubr.bf16.mxu0 0
        %402 = vmatmul.mubr.bf16.gmra.mrb[0].mxu0 %v287
        %v403 = vpop.f32.mrb[0].mxu0
        %v404 = vadd.f32 %v250, %v403
        %v405 = vpop.f32.mrb[0].mxu0
        %v406 = vpop.f32.mrb[0].mxu0
        %v407 = vadd.f32 %v250, %v406
        %v408 = vpop.f32.mrb[0].mxu0
        %409 = vmatprep.mubr.bf16.mxu0 0
        %410 = vmatmul.mubr.bf16.gmra.mrb[0].mxu0 %v290
        %v411 = vpop.f32.mrb[0].mxu0
        %v412 = vadd.f32 %v250, %v411
        %v413 = vpop.f32.mrb[0].mxu0
        %v414 = vpop.f32.mrb[0].mxu0
        %v415 = vadd.f32 %v250, %v414
        %v416 = vpop.f32.mrb[0].mxu0
        %417 = vmatprep.mubr.bf16.mxu0 0
        %418 = vmatmul.mubr.bf16.gmra.mrb[0].mxu0 %v293
        %v419 = vpop.f32.mrb[0].mxu0
        %v420 = vadd.f32 %v250, %v419
        %v421 = vpop.f32.mrb[0].mxu0
        %v422 = vpop.f32.mrb[0].mxu0
        %v423 = vadd.f32 %v250, %v422
        %v424 = vpop.f32.mrb[0].mxu0
        %425 = vmatprep.mubr.bf16.mxu0 0
        %426 = vmatmul.mubr.bf16.gmra.mrb[0].mxu0 %v296
        %v427 = vpop.f32.mrb[0].mxu0
        %v428 = vadd.f32 %v250, %v427
        %v429 = vpop.f32.mrb[0].mxu0
        %v430 = vpop.f32.mrb[0].mxu0
        %v431 = vadd.f32 %v250, %v430
        %v432 = vpop.f32.mrb[0].mxu0
        %433 = vmatprep.mubr.bf16.mxu0 0
        %434 = vmatmul.mubr.bf16.gmra.mrb[0].mxu0 %v299
        %v435 = vpop.f32.mrb[0].mxu0
        %v436 = vadd.f32 %v250, %v435
        %v437 = vpop.f32.mrb[0].mxu0
        %v438 = vpop.f32.mrb[0].mxu0
        %v439 = vadd.f32 %v250, %v438
        %v440 = vpop.f32.mrb[0].mxu0
        %441 = vmatprep.mubr.bf16.mxu0 0
        %442 = vmatmul.mubr.bf16.gmra.mrb[0].mxu0 %v302
        %v443 = vpop.f32.mrb[0].mxu0
        %v444 = vadd.f32 %v250, %v443
        %v445 = vpop.f32.mrb[0].mxu0
        %v446 = vpop.f32.mrb[0].mxu0
        %v447 = vadd.f32 %v250, %v446
        %v448 = vpop.f32.mrb[0].mxu0
        %449 = vmatprep.mubr.bf16.mxu0 0
        %450 = vmatmul.mubr.bf16.gmra.mrb[0].mxu0 %v305
        %v451 = vpop.f32.mrb[0].mxu0
        %v452 = vadd.f32 %v250, %v451
        %v453 = vpop.f32.mrb[0].mxu0
        %v454 = vpop.f32.mrb[0].mxu0
        %v455 = vadd.f32 %v250, %v454
        %v456 = vpop.f32.mrb[0].mxu0
        %457 = vmatprep.mubr.bf16.mxu0 0
        %458 = vmatmul.mubr.bf16.gmra.mrb[0].mxu0 %v308
        %v459 = vpop.f32.mrb[0].mxu0
        %v460 = vadd.f32 %v250, %v459
        %v461 = vpop.f32.mrb[0].mxu0
        %v462 = vpop.f32.mrb[0].mxu0
        %v463 = vadd.f32 %v250, %v462
        %v464 = vpop.f32.mrb[0].mxu0
        %465 = vmatprep.mubr.bf16.mxu0 0
        %466 = vmatmul.mubr.bf16.gmra.mrb[0].mxu0 %v311
        %v467 = vpop.f32.mrb[0].mxu0
        %v468 = vadd.f32 %v250, %v467
        %v469 = vpop.f32.mrb[0].mxu0
        %v470 = vpop.f32.mrb[0].mxu0
        %v471 = vadd.f32 %v250, %v470
        %v472 = vpop.f32.mrb[0].mxu0
        %473 = vdwg.mxu0
        %474 = vst [vmem:[%s172] sm:$0xff] %v348
        %475 = vst [vmem:[%s172 + $0x8] sm:$0xff] %v351
        %476 = vst [vmem:[%s172 + $0x10] sm:$0xff] %v356
        %477 = vst [vmem:[%s172 + $0x18] sm:$0xff] %v359
        %478 = vst [vmem:[%s172 + $0x20] sm:$0xff] %v364
        %479 = vst [vmem:[%s172 + $0x28] sm:$0xff] %v367
        %480 = vst [vmem:[%s172 + $0x30] sm:$0xff] %v372
        %481 = vst [vmem:[%s172 + $0x38] sm:$0xff] %v375
        %482 = vst [vmem:[%s172 + $0x40] sm:$0xff] %v380
        %483 = vst [vmem:[%s172 + $0x48] sm:$0xff] %v383
        %484 = vst [vmem:[%s172 + $0x50] sm:$0xff] %v388
        %485 = vst [vmem:[%s172 + $0x58] sm:$0xff] %v391
        %486 = vst [vmem:[%s172 + $0x60] sm:$0xff] %v396
        %487 = vst [vmem:[%s172 + $0x68] sm:$0xff] %v399
        %488 = vst [vmem:[%s172 + $0x70] sm:$0xff] %v404
        %489 = vst [vmem:[%s172 + $0x78] sm:$0xff] %v407
        %490 = vst [vmem:[%s172 + $0x80] sm:$0xff] %v412
        %491 = vst [vmem:[%s172 + $0x88] sm:$0xff] %v415
        %492 = vst [vmem:[%s172 + $0x90] sm:$0xff] %v420
        %493 = vst [vmem:[%s172 + $0x98] sm:$0xff] %v423
        %494 = vst [vmem:[%s172 + $0xa0] sm:$0xff] %v428
        %495 = vst [vmem:[%s172 + $0xa8] sm:$0xff] %v431
        %496 = vst [vmem:[%s172 + $0xb0] sm:$0xff] %v436
        %497 = vst [vmem:[%s172 + $0xb8] sm:$0xff] %v439
        %498 = vst [vmem:[%s172 + $0xc0] sm:$0xff] %v444
        %499 = vst [vmem:[%s172 + $0xc8] sm:$0xff] %v447
        %500 = vst [vmem:[%s172 + $0xd0] sm:$0xff] %v452
        %501 = vst [vmem:[%s172 + $0xd8] sm:$0xff] %v455
        %502 = vst [vmem:[%s172 + $0xe0] sm:$0xff] %v460
        %503 = vst [vmem:[%s172 + $0xe8] sm:$0xff] %v463
        %504 = vst [vmem:[%s172 + $0xf0] sm:$0xff] %v468
        %505 = vst [vmem:[%s172 + $0xf8] sm:$0xff] %v471
        %s506 = sand.u32 %s90, 1
        %s507 = sand.u32 %s90, 1
        %s508 = smul.addr %s507, 256
        %s509 = scalar_lea.vmem [#allocation2], %s508
        // Predicated region
        $region33: #{logistic_regression_forward.1} parent=31 // pred_check
          %p510 = pneg %p100
        $region34: #{logistic_regression_forward.1} parent=31 // pred_check_branch
          %512 = sbr.rel (%p510) target = $region36
        $region35: #{logistic_regression_forward.1} parent=31 // pred_region
          %s513 = smul.u32 32, %s14
          %s514 = ssub.s32 48, %s513
          %p515 = scmp.lt.s32.totalorder %s514, 32
          %s516 = scalar_select %p515, %s514, 32
          %s517 = smul.u32 128, %s516
          %p518 = scmp.ne.s32.totalorder 0, %s517
          %s519 = smul.addr %s513, 8
          %s520 = scalar_lea.vmem %s3, %s519
          // Predicated region
          $region37: #{logistic_regression_forward.1} parent=35 // pred_check
            %p521 = pneg %p518
          $region38: #{logistic_regression_forward.1} parent=35 // pred_check_branch
            %523 = sbr.rel (%p521) target = $region40
          $region39: #{logistic_regression_forward.1} parent=35 // pred_region
            // Predicated region
            $region41: #{logistic_regression_forward.1} parent=39 // pred_check
              _
            $region42: #{logistic_regression_forward.1} parent=39 // pred_check_branch
              %525 = sbr.rel (0) target = $region44
            $region43: #{logistic_regression_forward.1} parent=39 // pred_region
              // Predicated region
              $region63: #{logistic_regression_forward.1} parent=43 // pred_check
                _
              $region64: #{logistic_regression_forward.1} parent=43 // pred_check_branch
                %636 = sbr.rel (0) target = $region66
              $region65: #{logistic_regression_forward.1} parent=43 // pred_region
                %s637 = sshrl.u32 %s516, 5
                // While loop
                $region67: #{logistic_regression_forward.1} parent=65 // loop_pre_header
                  _
                $region68: #{logistic_regression_forward.1} parent=65 // loop_header
                  %s639 = sphi 0, %s641
                  %p640 = scmp.ge.s32.totalorder %s639, %s637
                  %s644 = sphi 0, %s713
                  %s645 = sphi %s509, %s716
                  %s646 = sphi %s520, %s717
                $region69: #{logistic_regression_forward.1} parent=65 // loop_header_branch
                  %643 = sbr.rel (%p640) target = $region73
                $region70: #{logistic_regression_forward.1} parent=65 // loop_body
                  %v647 = vld [vmem:[%s645] sm:$0xff]
                  %648 = vst [vmem:[%s646] sm:$0xff] %v647
                  %v649 = vld [vmem:[%s645 + $0x8] sm:$0xff]
                  %650 = vst [vmem:[%s646 + $0x8] sm:$0xff] %v649
                  %v651 = vld [vmem:[%s645 + $0x10] sm:$0xff]
                  %652 = vst [vmem:[%s646 + $0x10] sm:$0xff] %v651
                  %v653 = vld [vmem:[%s645 + $0x18] sm:$0xff]
                  %654 = vst [vmem:[%s646 + $0x18] sm:$0xff] %v653
                  %v655 = vld [vmem:[%s645 + $0x20] sm:$0xff]
                  %656 = vst [vmem:[%s646 + $0x20] sm:$0xff] %v655
                  %v657 = vld [vmem:[%s645 + $0x28] sm:$0xff]
                  %658 = vst [vmem:[%s646 + $0x28] sm:$0xff] %v657
                  %v659 = vld [vmem:[%s645 + $0x30] sm:$0xff]
                  %660 = vst [vmem:[%s646 + $0x30] sm:$0xff] %v659
                  %v661 = vld [vmem:[%s645 + $0x38] sm:$0xff]
                  %662 = vst [vmem:[%s646 + $0x38] sm:$0xff] %v661
                  %v663 = vld [vmem:[%s645 + $0x40] sm:$0xff]
                  %664 = vst [vmem:[%s646 + $0x40] sm:$0xff] %v663
                  %v665 = vld [vmem:[%s645 + $0x48] sm:$0xff]
                  %666 = vst [vmem:[%s646 + $0x48] sm:$0xff] %v665
                  %v667 = vld [vmem:[%s645 + $0x50] sm:$0xff]
                  %668 = vst [vmem:[%s646 + $0x50] sm:$0xff] %v667
                  %v669 = vld [vmem:[%s645 + $0x58] sm:$0xff]
                  %670 = vst [vmem:[%s646 + $0x58] sm:$0xff] %v669
                  %v671 = vld [vmem:[%s645 + $0x60] sm:$0xff]
                  %672 = vst [vmem:[%s646 + $0x60] sm:$0xff] %v671
                  %v673 = vld [vmem:[%s645 + $0x68] sm:$0xff]
                  %674 = vst [vmem:[%s646 + $0x68] sm:$0xff] %v673
                  %v675 = vld [vmem:[%s645 + $0x70] sm:$0xff]
                  %676 = vst [vmem:[%s646 + $0x70] sm:$0xff] %v675
                  %v677 = vld [vmem:[%s645 + $0x78] sm:$0xff]
                  %678 = vst [vmem:[%s646 + $0x78] sm:$0xff] %v677
                  %v679 = vld [vmem:[%s645 + $0x80] sm:$0xff]
                  %680 = vst [vmem:[%s646 + $0x80] sm:$0xff] %v679
                  %v681 = vld [vmem:[%s645 + $0x88] sm:$0xff]
                  %682 = vst [vmem:[%s646 + $0x88] sm:$0xff] %v681
                  %v683 = vld [vmem:[%s645 + $0x90] sm:$0xff]
                  %684 = vst [vmem:[%s646 + $0x90] sm:$0xff] %v683
                  %v685 = vld [vmem:[%s645 + $0x98] sm:$0xff]
                  %686 = vst [vmem:[%s646 + $0x98] sm:$0xff] %v685
                  %v687 = vld [vmem:[%s645 + $0xa0] sm:$0xff]
                  %688 = vst [vmem:[%s646 + $0xa0] sm:$0xff] %v687
                  %v689 = vld [vmem:[%s645 + $0xa8] sm:$0xff]
                  %690 = vst [vmem:[%s646 + $0xa8] sm:$0xff] %v689
                  %v691 = vld [vmem:[%s645 + $0xb0] sm:$0xff]
                  %692 = vst [vmem:[%s646 + $0xb0] sm:$0xff] %v691
                  %v693 = vld [vmem:[%s645 + $0xb8] sm:$0xff]
                  %694 = vst [vmem:[%s646 + $0xb8] sm:$0xff] %v693
                  %v695 = vld [vmem:[%s645 + $0xc0] sm:$0xff]
                  %696 = vst [vmem:[%s646 + $0xc0] sm:$0xff] %v695
                  %v697 = vld [vmem:[%s645 + $0xc8] sm:$0xff]
                  %698 = vst [vmem:[%s646 + $0xc8] sm:$0xff] %v697
                  %v699 = vld [vmem:[%s645 + $0xd0] sm:$0xff]
                  %700 = vst [vmem:[%s646 + $0xd0] sm:$0xff] %v699
                  %v701 = vld [vmem:[%s645 + $0xd8] sm:$0xff]
                  %702 = vst [vmem:[%s646 + $0xd8] sm:$0xff] %v701
                  %v703 = vld [vmem:[%s645 + $0xe0] sm:$0xff]
                  %704 = vst [vmem:[%s646 + $0xe0] sm:$0xff] %v703
                  %v705 = vld [vmem:[%s645 + $0xe8] sm:$0xff]
                  %706 = vst [vmem:[%s646 + $0xe8] sm:$0xff] %v705
                  %v707 = vld [vmem:[%s645 + $0xf0] sm:$0xff]
                  %708 = vst [vmem:[%s646 + $0xf0] sm:$0xff] %v707
                  %v709 = vld [vmem:[%s645 + $0xf8] sm:$0xff]
                  %710 = vst [vmem:[%s646 + $0xf8] sm:$0xff] %v709
                  %s711 = sadd.s32 1, %s644
                  %p712 = scmp.ge.s32.totalorder %s711, %s637
                  %s713 = scalar_select %p712, 0, %s711
                  %s714 = smul.u32 %s713, 256
                  %s715 = smul.u32 %s713, 256
                  %s716 = scalar_lea.vmem %s509, %s714 [#allocation2]
                  %s717 = scalar_lea.vmem %s520, %s715
                $region71: #{logistic_regression_forward.1} parent=65 // loop_footer
                  %s641 = sadd.s32 %s639, 1
                $region72: #{logistic_regression_forward.1} parent=65 // loop_footer_branch
                  %638 = sbr.rel target = $region68
                $region73: #{logistic_regression_forward.1} parent=65 // loop_exit
                  _
                %s718 = sshrl.u32 %s516, 5
                %s719 = sand.u32 %s516, 31
                %s720 = smul.u32 %s718, 32
                %s721 = smul.u32 8, %s720
                %s722 = scalar_lea.vmem %s509, %s721 [#allocation2]
                %s723 = smul.u32 8, %s720
                %s724 = scalar_lea.vmem %s520, %s723
                // While loop
                $region74: #{logistic_regression_forward.1} parent=65 // loop_pre_header
                  _
                $region75: #{logistic_regression_forward.1} parent=65 // loop_header
                  %s726 = sphi 0, %s728
                  %p727 = scmp.ge.s32.totalorder %s726, %s719
                  %s731 = sphi 0, %s738
                  %s732 = sphi %s722, %s741
                  %s733 = sphi %s724, %s742
                $region76: #{logistic_regression_forward.1} parent=65 // loop_header_branch
                  %730 = sbr.rel (%p727) target = $region80
                $region77: #{logistic_regression_forward.1} parent=65 // loop_body
                  %v734 = vld [vmem:[%s732] sm:$0xff]
                  %735 = vst [vmem:[%s733] sm:$0xff] %v734
                  %s736 = sadd.s32 1, %s731
                  %p737 = scmp.ge.s32.totalorder %s736, %s719
                  %s738 = scalar_select %p737, 0, %s736
                  %s739 = smul.u32 %s738, 8
                  %s740 = smul.u32 %s738, 8
                  %s741 = scalar_lea.vmem %s722, %s739 [#allocation2]
                  %s742 = scalar_lea.vmem %s724, %s740
                $region78: #{logistic_regression_forward.1} parent=65 // loop_footer
                  %s728 = sadd.s32 %s726, 1
                $region79: #{logistic_regression_forward.1} parent=65 // loop_footer_branch
                  %725 = sbr.rel target = $region75
                $region80: #{logistic_regression_forward.1} parent=65 // loop_exit
                  _
              $region66: #{logistic_regression_forward.1} parent=43 // pred_fallthru
                _
              // Predicated region
              $region81: #{logistic_regression_forward.1} parent=43 // pred_check
                _
              $region82: #{logistic_regression_forward.1} parent=43 // pred_check_branch
                %744 = sbr.rel target = $region84
              $region83: #{logistic_regression_forward.1} parent=43 // pred_region
                _
              $region84: #{logistic_regression_forward.1} parent=43 // pred_fallthru
                _
            $region44: #{logistic_regression_forward.1} parent=39 // pred_fallthru
              _
            // Predicated region
            $region45: #{logistic_regression_forward.1} parent=39 // pred_check
              _
            $region46: #{logistic_regression_forward.1} parent=39 // pred_check_branch
              %527 = sbr.rel target = $region48
            $region47: #{logistic_regression_forward.1} parent=39 // pred_region
              %s529 = sshrl.u32 %s516, 5
              // While loop
              $region49: #{logistic_regression_forward.1} parent=47 // loop_pre_header
                _
              $region50: #{logistic_regression_forward.1} parent=47 // loop_header
                %s531 = sphi 0, %s533
                %p532 = scmp.ge.s32.totalorder %s531, %s529
                %s536 = sphi 0, %s605
                %s537 = sphi %s509, %s608
                %s538 = sphi %s520, %s609
              $region51: #{logistic_regression_forward.1} parent=47 // loop_header_branch
                %535 = sbr.rel (%p532) target = $region55
              $region52: #{logistic_regression_forward.1} parent=47 // loop_body
                %v539 = vld [vmem:[%s537] sm:$0xff]
                %540 = vst [vmem:[%s538] sm:$0xff] %v539
                %v541 = vld [vmem:[%s537 + $0x8] sm:$0xff]
                %542 = vst [vmem:[%s538 + $0x8] sm:$0xff] %v541
                %v543 = vld [vmem:[%s537 + $0x10] sm:$0xff]
                %544 = vst [vmem:[%s538 + $0x10] sm:$0xff] %v543
                %v545 = vld [vmem:[%s537 + $0x18] sm:$0xff]
                %546 = vst [vmem:[%s538 + $0x18] sm:$0xff] %v545
                %v547 = vld [vmem:[%s537 + $0x20] sm:$0xff]
                %548 = vst [vmem:[%s538 + $0x20] sm:$0xff] %v547
                %v549 = vld [vmem:[%s537 + $0x28] sm:$0xff]
                %550 = vst [vmem:[%s538 + $0x28] sm:$0xff] %v549
                %v551 = vld [vmem:[%s537 + $0x30] sm:$0xff]
                %552 = vst [vmem:[%s538 + $0x30] sm:$0xff] %v551
                %v553 = vld [vmem:[%s537 + $0x38] sm:$0xff]
                %554 = vst [vmem:[%s538 + $0x38] sm:$0xff] %v553
                %v555 = vld [vmem:[%s537 + $0x40] sm:$0xff]
                %556 = vst [vmem:[%s538 + $0x40] sm:$0xff] %v555
                %v557 = vld [vmem:[%s537 + $0x48] sm:$0xff]
                %558 = vst [vmem:[%s538 + $0x48] sm:$0xff] %v557
                %v559 = vld [vmem:[%s537 + $0x50] sm:$0xff]
                %560 = vst [vmem:[%s538 + $0x50] sm:$0xff] %v559
                %v561 = vld [vmem:[%s537 + $0x58] sm:$0xff]
                %562 = vst [vmem:[%s538 + $0x58] sm:$0xff] %v561
                %v563 = vld [vmem:[%s537 + $0x60] sm:$0xff]
                %564 = vst [vmem:[%s538 + $0x60] sm:$0xff] %v563
                %v565 = vld [vmem:[%s537 + $0x68] sm:$0xff]
                %566 = vst [vmem:[%s538 + $0x68] sm:$0xff] %v565
                %v567 = vld [vmem:[%s537 + $0x70] sm:$0xff]
                %568 = vst [vmem:[%s538 + $0x70] sm:$0xff] %v567
                %v569 = vld [vmem:[%s537 + $0x78] sm:$0xff]
                %570 = vst [vmem:[%s538 + $0x78] sm:$0xff] %v569
                %v571 = vld [vmem:[%s537 + $0x80] sm:$0xff]
                %572 = vst [vmem:[%s538 + $0x80] sm:$0xff] %v571
                %v573 = vld [vmem:[%s537 + $0x88] sm:$0xff]
                %574 = vst [vmem:[%s538 + $0x88] sm:$0xff] %v573
                %v575 = vld [vmem:[%s537 + $0x90] sm:$0xff]
                %576 = vst [vmem:[%s538 + $0x90] sm:$0xff] %v575
                %v577 = vld [vmem:[%s537 + $0x98] sm:$0xff]
                %578 = vst [vmem:[%s538 + $0x98] sm:$0xff] %v577
                %v579 = vld [vmem:[%s537 + $0xa0] sm:$0xff]
                %580 = vst [vmem:[%s538 + $0xa0] sm:$0xff] %v579
                %v581 = vld [vmem:[%s537 + $0xa8] sm:$0xff]
                %582 = vst [vmem:[%s538 + $0xa8] sm:$0xff] %v581
                %v583 = vld [vmem:[%s537 + $0xb0] sm:$0xff]
                %584 = vst [vmem:[%s538 + $0xb0] sm:$0xff] %v583
                %v585 = vld [vmem:[%s537 + $0xb8] sm:$0xff]
                %586 = vst [vmem:[%s538 + $0xb8] sm:$0xff] %v585
                %v587 = vld [vmem:[%s537 + $0xc0] sm:$0xff]
                %588 = vst [vmem:[%s538 + $0xc0] sm:$0xff] %v587
                %v589 = vld [vmem:[%s537 + $0xc8] sm:$0xff]
                %590 = vst [vmem:[%s538 + $0xc8] sm:$0xff] %v589
                %v591 = vld [vmem:[%s537 + $0xd0] sm:$0xff]
                %592 = vst [vmem:[%s538 + $0xd0] sm:$0xff] %v591
                %v593 = vld [vmem:[%s537 + $0xd8] sm:$0xff]
                %594 = vst [vmem:[%s538 + $0xd8] sm:$0xff] %v593
                %v595 = vld [vmem:[%s537 + $0xe0] sm:$0xff]
                %596 = vst [vmem:[%s538 + $0xe0] sm:$0xff] %v595
                %v597 = vld [vmem:[%s537 + $0xe8] sm:$0xff]
                %598 = vst [vmem:[%s538 + $0xe8] sm:$0xff] %v597
                %v599 = vld [vmem:[%s537 + $0xf0] sm:$0xff]
                %600 = vst [vmem:[%s538 + $0xf0] sm:$0xff] %v599
                %v601 = vld [vmem:[%s537 + $0xf8] sm:$0xff]
                %602 = vst [vmem:[%s538 + $0xf8] sm:$0xff] %v601
                %s603 = sadd.s32 1, %s536
                %p604 = scmp.ge.s32.totalorder %s603, %s529
                %s605 = scalar_select %p604, 0, %s603
                %s606 = smul.u32 %s605, 256
                %s607 = smul.u32 %s605, 256
                %s608 = scalar_lea.vmem %s509, %s606 [#allocation2]
                %s609 = scalar_lea.vmem %s520, %s607
              $region53: #{logistic_regression_forward.1} parent=47 // loop_footer
                %s533 = sadd.s32 %s531, 1
              $region54: #{logistic_regression_forward.1} parent=47 // loop_footer_branch
                %530 = sbr.rel target = $region50
              $region55: #{logistic_regression_forward.1} parent=47 // loop_exit
                _
              %s610 = sshrl.u32 %s516, 5
              %s611 = sand.u32 %s516, 31
              %s612 = smul.u32 %s610, 32
              %s613 = smul.u32 8, %s612
              %s614 = scalar_lea.vmem %s509, %s613 [#allocation2]
              %s615 = smul.u32 8, %s612
              %s616 = scalar_lea.vmem %s520, %s615
              // While loop
              $region56: #{logistic_regression_forward.1} parent=47 // loop_pre_header
                _
              $region57: #{logistic_regression_forward.1} parent=47 // loop_header
                %s618 = sphi 0, %s620
                %p619 = scmp.ge.s32.totalorder %s618, %s611
                %s623 = sphi 0, %s630
                %s624 = sphi %s614, %s633
                %s625 = sphi %s616, %s634
              $region58: #{logistic_regression_forward.1} parent=47 // loop_header_branch
                %622 = sbr.rel (%p619) target = $region62
              $region59: #{logistic_regression_forward.1} parent=47 // loop_body
                %v626 = vld [vmem:[%s624] sm:$0xff]
                %627 = vst [vmem:[%s625] sm:$0xff] %v626
                %s628 = sadd.s32 1, %s623
                %p629 = scmp.ge.s32.totalorder %s628, %s611
                %s630 = scalar_select %p629, 0, %s628
                %s631 = smul.u32 %s630, 8
                %s632 = smul.u32 %s630, 8
                %s633 = scalar_lea.vmem %s614, %s631 [#allocation2]
                %s634 = scalar_lea.vmem %s616, %s632
              $region60: #{logistic_regression_forward.1} parent=47 // loop_footer
                %s620 = sadd.s32 %s618, 1
              $region61: #{logistic_regression_forward.1} parent=47 // loop_footer_branch
                %617 = sbr.rel target = $region57
              $region62: #{logistic_regression_forward.1} parent=47 // loop_exit
                _
            $region48: #{logistic_regression_forward.1} parent=39 // pred_fallthru
              _
          $region40: #{logistic_regression_forward.1} parent=35 // pred_fallthru
            _
          %745 = vnop
        $region36: #{logistic_regression_forward.1} parent=31 // pred_fallthru
          _
      $region32: #{logistic_regression_forward.1} parent=5 // pred_fallthru
        _
      %p746 = scmp.le.s32.totalorder 2, %s9
      // Predicated region
      $region85: #{logistic_regression_forward.1} parent=5 // pred_check
        %p747 = pneg %p746
      $region86: #{logistic_regression_forward.1} parent=5 // pred_check_branch
        %749 = sbr.rel (%p747) target = $region88
      $region87: #{logistic_regression_forward.1} parent=5 // pred_region
        %s750 = ssub.s32 %s9, 2
        // Predicated region
        $region89: #{logistic_regression_forward.1} parent=87 // pred_check
          %p751 = pneg %p106
        $region90: #{logistic_regression_forward.1} parent=87 // pred_check_branch
          %753 = sbr.rel (%p751) target = $region92
        $region91: #{logistic_regression_forward.1} parent=87 // pred_region
          %s754 = sand.u32 %s91, 1
          %s755 = sand.u32 %s91, 1
          %s756 = smul.addr %s755, 256
          %s757 = scalar_lea.vmem [#allocation2], %s756
        $region92: #{logistic_regression_forward.1} parent=87 // pred_fallthru
          _
      $region88: #{logistic_regression_forward.1} parent=5 // pred_fallthru
        _
    $region6: #{logistic_regression_forward.1} parent=1 // loop_footer
      %s13 = sadd.s32 1, %s9
    $region7: #{logistic_regression_forward.1} parent=1 // loop_footer_branch
      %8 = sbr.rel target = $region3
    $region8: #{logistic_regression_forward.1} parent=1 // loop_exit
      _

</llo_original>
